<compile_context>
chip_gen: v6e
topology: v6e:2x2x1
jax: 0.10.0
libtpu: 0.0.40
codegen_flags: <defaults>
</compile_context>

<pallas_src>
import functools
import numpy as np

import jax
import jax.numpy as jnp
from jax import lax
from jax.experimental import pallas as pl
from jax.experimental.pallas import tpu as pltpu

VOXEL_SIZE = 0.005
POINT_CHANNEL = 7
CIN_PAD = 8                      # input channels padded to one sublane group
CONV_OUT = 32
KERNEL_VOLUME = 27               # 3x3x3
BN_EPS = 1e-5


def _vmem_limit_bytes():
    """Generation-aware scoped-VMEM cap (v7x has 64 MiB physical; v5e/v6e 128)."""
    try:
        kind = jax.devices()[0].device_kind.lower()
    except Exception:
        kind = ""
    if "v7" in kind:
        return 48 * 1024 * 1024
    return 64 * 1024 * 1024


def _pick_tile_m(m):
    """Largest lane-aligned voxel tile (<=1024) that still leaves >=2 grid steps."""
    half = -(-m // 2)
    return int(max(256, min(1024, -(-half // 128) * 128)))


# ---------------------------------------------------------------------------
# Kernel 1: per-batch coordinate min-shift + voxel quantization (channel-major,
# points on lanes).  Full-dim blocks -> no wrapper padding / edge replication.
# ---------------------------------------------------------------------------
def _shift_quantize_kernel(x_ref, feats_ref, vox_ref, *, voxel_size):
    xb = x_ref[...]                                      # (7, N)
    cmin = jnp.min(xb, axis=1, keepdims=True)            # (7, 1) lane reduce (XLU)
    row = lax.broadcasted_iota(jnp.int32, cmin.shape, 0)
    cmin = jnp.where(row < 3, cmin, 0.0)                 # shift only xyz rows 0..2
    shifted = xb - cmin                                   # rows 3..6 pass through
    feats_ref[...] = shifted                              # lane-dense store
    # true divide (not reciprocal-mul) to match torchsparse's floor(c / vs)
    vox_ref[...] = jnp.floor(shifted[:3, :] / voxel_size).astype(jnp.int32)


def shift_and_quantize(x, voxel_size=VOXEL_SIZE):
    """x: (B, N, 7) channel-last.  Returns feats (B, 7, N) f32, vox (B, 3, N) i32."""
    B, N, C = x.shape
    xt = jnp.transpose(x, (0, 2, 1))                      # single layout pass
    kernel = functools.partial(_shift_quantize_kernel, voxel_size=voxel_size)
    feats_t, vox_t = pl.pallas_call(
        kernel,
        grid=(B,),
        in_specs=[pl.BlockSpec((None, C, N), lambda b: (b, 0, 0))],
        out_specs=[
            pl.BlockSpec((None, C, N), lambda b: (b, 0, 0)),
            pl.BlockSpec((None, 3, N), lambda b: (b, 0, 0)),
        ],
        out_shape=[
            jax.ShapeDtypeStruct((B, C, N), jnp.float32),
            jax.ShapeDtypeStruct((B, 3, N), jnp.int32),
        ],
        compiler_params=pltpu.CompilerParams(dimension_semantics=("parallel",)),
    )(xt)
    return feats_t, vox_t


# ---------------------------------------------------------------------------
# Kernel 2a: submanifold Conv3d(7->32, k=3, bias=False) as a sum over the 27
# offsets, lane-dense (32, TILE_M) output, + per-tile BatchNorm partial stats.
#   g:   (8, 27, Mp) f32 gathered neighbor features (zero column for missing /
#        padded voxels), w_t: (27, 32, 8) f32 pre-transposed weights.
# ---------------------------------------------------------------------------
def _conv_stats_kernel(g_ref, w_ref, conv_ref, sum_ref, ssq_ref):
    acc = jnp.dot(w_ref[0], g_ref[:, 0, :], preferred_element_type=jnp.float32)
    for k in range(1, KERNEL_VOLUME):
        acc = acc + jnp.dot(w_ref[k], g_ref[:, k, :],
                            preferred_element_type=jnp.float32)
    conv_ref[...] = acc                                   # (32, TILE_M) lane-dense
    sum_ref[...] = jnp.sum(acc, axis=1, keepdims=True)    # (32, 1) XLU lane reduce
    ssq_ref[...] = jnp.sum(acc * acc, axis=1, keepdims=True)


def sparse_conv_stats(g, w_t, tile_m, vmem_bytes):
    C, KV, Mp = g.shape
    num_tiles = Mp // tile_m
    return pl.pallas_call(
        _conv_stats_kernel,
        grid=(num_tiles,),
        in_specs=[
            pl.BlockSpec((C, KV, tile_m), lambda i: (0, 0, i)),
            pl.BlockSpec((KV, CONV_OUT, C), lambda i: (0, 0, 0)),
        ],
        out_specs=[
            pl.BlockSpec((CONV_OUT, tile_m), lambda i: (0, i)),
            pl.BlockSpec((None, CONV_OUT, 1), lambda i: (i, 0, 0)),
            pl.BlockSpec((None, CONV_OUT, 1), lambda i: (i, 0, 0)),
        ],
        out_shape=[
            jax.ShapeDtypeStruct((CONV_OUT, Mp), jnp.float32),
            jax.ShapeDtypeStruct((num_tiles, CONV_OUT, 1), jnp.float32),
            jax.ShapeDtypeStruct((num_tiles, CONV_OUT, 1), jnp.float32),
        ],
        compiler_params=pltpu.CompilerParams(
            dimension_semantics=("parallel",),
            vmem_limit_bytes=vmem_bytes,
        ),
    )(g, w_t)


# ---------------------------------------------------------------------------
# Kernel 2b: BatchNorm affine, in place (aliased output), per-sublane broadcast.
# ---------------------------------------------------------------------------
def _bn_apply_kernel(conv_ref, scale_ref, shift_ref, o_ref):
    o_ref[...] = conv_ref[...] * scale_ref[...] + shift_ref[...]


def bn_apply(conv_t, scale, shift, tile_m, vmem_bytes):
    Cout, Mp = conv_t.shape
    num_tiles = Mp // tile_m
    return pl.pallas_call(
        _bn_apply_kernel,
        grid=(num_tiles,),
        in_specs=[
            pl.BlockSpec((Cout, tile_m), lambda i: (0, i)),
            pl.BlockSpec((Cout, 1), lambda i: (0, 0)),
            pl.BlockSpec((Cout, 1), lambda i: (0, 0)),
        ],
        out_specs=pl.BlockSpec((Cout, tile_m), lambda i: (0, i)),
        out_shape=jax.ShapeDtypeStruct((Cout, Mp), jnp.float32),
        input_output_aliases={0: 0},                      # in-place over conv_t
        compiler_params=pltpu.CompilerParams(
            dimension_semantics=("parallel",),
            vmem_limit_bytes=vmem_bytes,
        ),
    )(conv_t, scale, shift)


# ---------------------------------------------------------------------------
# Host-side glue: voxel dedup + kernel-map construction (data-dependent; the
# torch code also does this on CPU via .cpu().numpy() + sparse_quantize).
# ---------------------------------------------------------------------------
def ravel_hash(vox):
    vox = vox - vox.min(axis=0)
    dims = vox.max(axis=0).astype(np.uint64) + 1
    h = np.zeros(vox.shape[0], dtype=np.uint64)
    for k in range(vox.shape[1] - 1):
        h += vox[:, k].astype(np.uint64)
        h *= dims[k + 1]
    h += vox[:, -1].astype(np.uint64)
    return h


def build_kernel_map(coords_u):
    """Vectorized 27-offset kernel map via sorted-hash searchsorted."""
    coords_u = coords_u.astype(np.int64)
    m = coords_u.shape[0]
    lo = coords_u.min(axis=0) - 1
    dims = coords_u.max(axis=0) - lo + 2                  # covers all +-1 neighbors

    def key_of(c):
        return ((c[:, 0] - lo[0]) * dims[1] + (c[:, 1] - lo[1])) * dims[2] \
               + (c[:, 2] - lo[2])

    keys = key_of(coords_u)
    order = np.argsort(keys)
    keys_sorted = keys[order]
    offsets = np.array([(dx, dy, dz) for dx in (-1, 0, 1)
                        for dy in (-1, 0, 1) for dz in (-1, 0, 1)], dtype=np.int64)
    nbr = np.full((KERNEL_VOLUME, m), -1, dtype=np.int32)
    for k in range(KERNEL_VOLUME):
        q = key_of(coords_u + offsets[k])
        pos = np.minimum(np.searchsorted(keys_sorted, q), m - 1)
        hit = keys_sorted[pos] == q
        nbr[k] = np.where(hit, order[pos], -1).astype(np.int32)
    return nbr


if __name__ == "__main__":
    key = jax.random.PRNGKey(0)
    kx, ko, kw = jax.random.split(key, 3)

    # x: (batch=2, points=200, point_channel=7); first 3 channels are xyz
    B, N = 2, 200
    coords = jax.random.uniform(kx, (B, N, 3), jnp.float32, 0.0, 0.05)
    other = jax.random.normal(ko, (B, N, POINT_CHANNEL - 3), dtype=jnp.float32)
    x = jnp.concatenate([coords, other], axis=-1)

    # --- Pallas kernel 1: min-shift + voxel quantization, channel-major output
    feats_t, vox_t = shift_and_quantize(x)     # (B,7,N) f32, (B,3,N) int32

    # --- host-side sparse_quantize dedup (torch forward uses batch 0 only)
    vox0 = np.asarray(vox_t[0]).T              # (N, 3) — single D2H sync
    _, uniq_idx = np.unique(ravel_hash(vox0), return_index=True)
    coords_u = vox0[uniq_idx]
    M = int(coords_u.shape[0])

    # --- vectorized kernel map (host), then one device gather into the
    #     kernel-ready (8, 27, Mp) layout (no transpose / reshape / K-pad passes)
    nbr = build_kernel_map(coords_u)                              # (27, M)
    tile_m = _pick_tile_m(M)
    num_tiles = max(2, -(-M // tile_m))        # >=2 grid steps -> both v7x TCs busy
    Mp = num_tiles * tile_m
    vmem_bytes = _vmem_limit_bytes()

    idx_dev = jnp.asarray(uniq_idx.astype(np.int32))
    table = feats_t[0][:, idx_dev]                                # (7, M) lane gather
    table = jnp.concatenate(
        [table, jnp.zeros((POINT_CHANNEL, 1), jnp.float32)], axis=1)  # col M = zeros
    table = jnp.pad(table, ((0, CIN_PAD - POINT_CHANNEL), (0, 0)))    # (8, M+1)

    safe_nbr = np.full((KERNEL_VOLUME, Mp), M, dtype=np.int32)    # pad -> zero col
    safe_nbr[:, :M] = np.where(nbr >= 0, nbr, M)
    g = jnp.take(table, jnp.asarray(safe_nbr), axis=1)            # (8, 27, Mp) f32

    # --- deterministic parameter init
    # fresh spnn.Conv3d(7, 32, 3): weight (27, 7, 32), bias=False (kept f32)
    w = 0.02 * jax.random.normal(kw, (KERNEL_VOLUME, POINT_CHANNEL, CONV_OUT),
                                 dtype=jnp.float32)
    w8 = jnp.pad(w, ((0, 0), (0, CIN_PAD - POINT_CHANNEL), (0, 0)))   # (27, 8, 32)
    w_t = jnp.transpose(w8, (0, 2, 1))                                # (27, 32, 8)
    # fresh spnn.BatchNorm(32): gamma=1, beta=0, training-mode batch stats
    gamma = jnp.ones((CONV_OUT,), jnp.float32)
    beta = jnp.zeros((CONV_OUT,), jnp.float32)

    # --- Pallas kernel 2a: lane-dense conv + per-tile BN partial stats
    conv_t, tsum, tssq = sparse_conv_stats(g, w_t, tile_m, vmem_bytes)

    # --- finalize BN statistics (padded columns are exact zeros; count = M).
    # Note: E[x^2]-mean^2 in f32 — fine at this activation scale (reviewed).
    inv_count = 1.0 / float(max(M, 1))
    mean = jnp.sum(tsum, axis=0)[:, 0] * inv_count                # (32,)
    var = jnp.maximum(jnp.sum(tssq, axis=0)[:, 0] * inv_count - mean * mean, 0.0)
    scale = gamma * lax.rsqrt(var + BN_EPS)
    shift = beta - mean * scale

    # --- Pallas kernel 2b: apply normalization in place over voxel tiles
    out_t = bn_apply(conv_t, scale[:, None], shift[:, None], tile_m, vmem_bytes)
    out = jnp.transpose(out_t[:, :M])                             # (M, 32) feats
    jax.block_until_ready(out)

    # TODO(synk): the torch forward calls exit(0) after BatchNorm; the
    # self.conv Sequential is dead code and is intentionally not executed.
    print("KERNEL_OK")
</pallas_src>

<mosaic_0001>
module attributes {stable_mosaic.version = 11 : i64} {
  func.func @_shift_quantize_kernel(%arg0: i32, %arg1: memref<1x7x200xf32, #tpu.memory_space<vmem>>, %arg2: memref<1x7x200xf32, #tpu.memory_space<vmem>>, %arg3: memref<1x3x200xi32, #tpu.memory_space<vmem>>) attributes {dimension_semantics = [#tpu.dimension_semantics<parallel>], iteration_bounds = array<i64: 2>, scalar_prefetch = 0 : i64, scratch_operands = 0 : i64, tpu.core_type = #tpu.core_type<tc>, window_params = [{transform_indices = @transform_0, window_bounds = array<i64: 1, 7, 200>}, {transform_indices = @transform_1, window_bounds = array<i64: 1, 7, 200>}, {transform_indices = @transform_2, window_bounds = array<i64: 1, 3, 200>}]} {
    %c0 = arith.constant 0 : index
    %c0_0 = arith.constant 0 : index
    %c0_1 = arith.constant 0 : index
    %0 = vector.load %arg1[%c0, %c0_0, %c0_1] : memref<1x7x200xf32, #tpu.memory_space<vmem>>, vector<1x7x200xf32>
    %1 = vector.shape_cast %0 : vector<1x7x200xf32> to vector<7x200xf32>
    %cst = arith.constant dense<0x7F800000> : vector<7xf32>
    %2 = vector.multi_reduction <minimumf>, %1, %cst [1] : vector<7x200xf32> to vector<7xf32>
    %3 = vector.shape_cast %2 : vector<7xf32> to vector<7x1xf32>
    %4 = tpu.iota {dimensions = array<i32: 0>} : vector<7x1xi32>
    %c3_i32 = arith.constant 3 : i32
    %5 = vector.broadcast %c3_i32 : i32 to vector<7x1xi32>
    %6 = arith.cmpi slt, %4, %5 : vector<7x1xi32>
    %cst_2 = arith.constant 0.000000e+00 : f32
    %7 = vector.broadcast %cst_2 : f32 to vector<7x1xf32>
    %8 = arith.select %6, %3, %7 : vector<7x1xi1>, vector<7x1xf32>
    %9 = vector.broadcast %8 : vector<7x1xf32> to vector<7x200xf32>
    %10 = arith.subf %1, %9 : vector<7x200xf32>
    %c0_3 = arith.constant 0 : index
    %c0_4 = arith.constant 0 : index
    %c0_5 = arith.constant 0 : index
    %11 = vector.load %arg2[%c0_3, %c0_4, %c0_5] : memref<1x7x200xf32, #tpu.memory_space<vmem>>, vector<1x7x200xf32>
    %12 = vector.shape_cast %11 : vector<1x7x200xf32> to vector<7x200xf32>
    %13 = vector.shape_cast %10 : vector<7x200xf32> to vector<1x7x200xf32>
    tpu.vector_store %arg2[%c0_3, %c0_4, %c0_5], %13 {strides = array<i32>} : memref<1x7x200xf32, #tpu.memory_space<vmem>>, vector<1x7x200xf32>,
    %14 = vector.extract_strided_slice %10 {offsets = [0, 0], sizes = [3, 200], strides = [1, 1]} : vector<7x200xf32> to vector<3x200xf32>
    %cst_6 = arith.constant 5.000000e-03 : f32
    %15 = vector.broadcast %cst_6 : f32 to vector<3x200xf32>
    %16 = arith.divf %14, %15 : vector<3x200xf32>
    %17 = math.floor %16 : vector<3x200xf32>
    %18 = arith.fptosi %17 : vector<3x200xf32> to vector<3x200xi32>
    %c0_7 = arith.constant 0 : index
    %c0_8 = arith.constant 0 : index
    %c0_9 = arith.constant 0 : index
    %19 = vector.load %arg3[%c0_7, %c0_8, %c0_9] : memref<1x3x200xi32, #tpu.memory_space<vmem>>, vector<1x3x200xi32>
    %20 = vector.shape_cast %19 : vector<1x3x200xi32> to vector<3x200xi32>
    %21 = vector.shape_cast %18 : vector<3x200xi32> to vector<1x3x200xi32>
    tpu.vector_store %arg3[%c0_7, %c0_8, %c0_9], %21 {strides = array<i32>} : memref<1x3x200xi32, #tpu.memory_space<vmem>>, vector<1x3x200xi32>,
    return
  }
  func.func @transform_0(%arg0: i32) -> (i32, i32, i32) {
    %c0_i32 = arith.constant 0 : i32
    %c0_i32_0 = arith.constant 0 : i32
    %c0_i32_1 = arith.constant 0 : i32
    return %arg0, %c0_i32, %c0_i32_0 : i32, i32, i32
  }
  func.func @transform_1(%arg0: i32) -> (i32, i32, i32) {
    %c0_i32 = arith.constant 0 : i32
    %c0_i32_0 = arith.constant 0 : i32
    %c0_i32_1 = arith.constant 0 : i32
    return %arg0, %c0_i32, %c0_i32_0 : i32, i32, i32
  }
  func.func @transform_2(%arg0: i32) -> (i32, i32, i32) {
    %c0_i32 = arith.constant 0 : i32
    %c0_i32_0 = arith.constant 0 : i32
    %c0_i32_1 = arith.constant 0 : i32
    return %arg0, %c0_i32, %c0_i32_0 : i32, i32, i32
  }
}

</mosaic_0001>

<llo_original>
// kernel: tpu_custom_call.1
$region0: #{tpu_custom_call.1}
  #allocation0 [shape = 'u32[]', space=smem, size = 0x4, offset = 0x4, fixed_abs, tag = 'smem constant byte address 0x4 - core index']
  #allocation1 [shape = 'u32[144,128]{1,0:T(1,128)}', space=vmem, size = 0x12000, scoped, tag = 'internal scratch']
  %s0 = inlined_call_operand.vmem [shape: f32[2,7,200], index: 0, kind: input, shape index: {}]
  %s1 = inlined_call_operand.vmem [shape: f32[2,7,200], index: 1, kind: output, shape index: {0}]
  %s2 = inlined_call_operand.vmem [shape: s32[2,3,200], index: 2, kind: output, shape index: {1}]
  %3 = xla_tuple %s1, %s2
  %s4 = sld [smem:[#allocation0]]
  $region45: #{tpu_custom_call.1} parent=0
    _
  %s6 = ssub.s32 1, %s4
  %s7 = scalar_select 0, %s6, %s4
  loop: start=0, step=1, limit=4
  $region2: #{tpu_custom_call.1} parent=0 // loop_pre_header
    _
  $region3: #{tpu_custom_call.1} parent=0 // loop_header
    %s9 = sphi 0, %s13
    %p10 = scmp.ge.s32.totalorder %s9, 4
    %s19 = sphi 0, %s21
    %s22 = sphi 0, %s19
    %s23 = sphi 0, %s22
    %s39 = sphi 0, %s23
    %s45 = sphi 0, %s47
    %s48 = sphi 0, %s45
    %s49 = sphi 0, %s48
    %s65 = sphi 0, %s49
    %s71 = sphi 0, %s73
    %s74 = sphi 0, %s71
    %s75 = sphi 0, %s74
    %s91 = sphi 0, %s75
  $region4: #{tpu_custom_call.1} parent=0 // loop_header_branch
    %12 = sbr.rel (%p10) target = $region8
  $region5: #{tpu_custom_call.1} parent=0 // loop_body
    %s14 = ssub.s32 %s9, 1
    %s15 = ssub.s32 %s9, 2
    %s16 = sadd.s32 %s9, 1
    %s17 = ssub.s32 %s9, %s16
    %p18 = scmp.eq.s32.totalorder %s17, 0
    %s20 = sadd.s32 %s19, 1
    %s21 = scalar_select %p18, %s19, %s20
    %p24 = pneg %p18
    %p25 = scmp.eq.s32.totalorder %s9, 1
    %p26 = por %p24, %p25
    %p27 = scmp.ne.s32.totalorder %s19, %s22
    %p28 = scmp.eq.s32.totalorder %s9, 0
    %p29 = por %p27, %p28
    %p30 = scmp.ne.s32.totalorder %s19, %s22
    %p31 = scmp.eq.s32.totalorder %s14, 1
    %p32 = por %p30, %p31
    %p33 = scmp.ne.s32.totalorder %s22, %s23
    %p34 = scmp.eq.s32.totalorder %s14, 0
    %p35 = por %p33, %p34
    %p36 = scmp.ne.s32.totalorder %s22, %s23
    %p37 = scmp.eq.s32.totalorder %s15, 1
    %p38 = por %p36, %p37
    %p40 = scmp.ne.s32.totalorder %s23, %s39
    %p41 = scmp.eq.s32.totalorder %s15, 0
    %p42 = por %p40, %p41
    %s43 = ssub.s32 %s9, %s16
    %p44 = scmp.eq.s32.totalorder %s43, 0
    %s46 = sadd.s32 %s45, 1
    %s47 = scalar_select %p44, %s45, %s46
    %p50 = pneg %p44
    %p51 = scmp.eq.s32.totalorder %s9, 1
    %p52 = por %p50, %p51
    %p53 = scmp.ne.s32.totalorder %s45, %s48
    %p54 = scmp.eq.s32.totalorder %s9, 0
    %p55 = por %p53, %p54
    %p56 = scmp.ne.s32.totalorder %s45, %s48
    %p57 = scmp.eq.s32.totalorder %s14, 1
    %p58 = por %p56, %p57
    %p59 = scmp.ne.s32.totalorder %s48, %s49
    %p60 = scmp.eq.s32.totalorder %s14, 0
    %p61 = por %p59, %p60
    %p62 = scmp.ne.s32.totalorder %s48, %s49
    %p63 = scmp.eq.s32.totalorder %s15, 1
    %p64 = por %p62, %p63
    %p66 = scmp.ne.s32.totalorder %s49, %s65
    %p67 = scmp.eq.s32.totalorder %s15, 0
    %p68 = por %p66, %p67
    %s69 = ssub.s32 %s9, %s16
    %p70 = scmp.eq.s32.totalorder %s69, 0
    %s72 = sadd.s32 %s71, 1
    %s73 = scalar_select %p70, %s71, %s72
    %p76 = pneg %p70
    %p77 = scmp.eq.s32.totalorder %s9, 1
    %p78 = por %p76, %p77
    %p79 = scmp.ne.s32.totalorder %s71, %s74
    %p80 = scmp.eq.s32.totalorder %s9, 0
    %p81 = por %p79, %p80
    %p82 = scmp.ne.s32.totalorder %s71, %s74
    %p83 = scmp.eq.s32.totalorder %s14, 1
    %p84 = por %p82, %p83
    %p85 = scmp.ne.s32.totalorder %s74, %s75
    %p86 = scmp.eq.s32.totalorder %s14, 0
    %p87 = por %p85, %p86
    %p88 = scmp.ne.s32.totalorder %s74, %s75
    %p89 = scmp.eq.s32.totalorder %s15, 1
    %p90 = por %p88, %p89
    %p92 = scmp.ne.s32.totalorder %s75, %s91
    %p93 = scmp.eq.s32.totalorder %s15, 0
    %p94 = por %p92, %p93
    %p95 = scmp.le.s32.totalorder 1, %s9
    %p96 = scmp.lt.s32.totalorder %s9, 3
    %p97 = pnand %p95, %p96
    %p98 = pneg %p97
    // Predicated region
    $region9: #{tpu_custom_call.1} parent=5 // pred_check
      _
    $region10: #{tpu_custom_call.1} parent=5 // pred_check_branch
      %100 = sbr.rel (%p97) target = $region12
    $region11: #{tpu_custom_call.1} parent=5 // pred_region
      %s101 = ssub.s32 %s9, 1
    $region12: #{tpu_custom_call.1} parent=5 // pred_fallthru
      _
    %p102 = scmp.lt.s32.totalorder %s9, 2
    // Predicated region
    $region13: #{tpu_custom_call.1} parent=5 // pred_check
      %p103 = pneg %p102
    $region14: #{tpu_custom_call.1} parent=5 // pred_check_branch
      %105 = sbr.rel (%p103) target = $region16
    $region15: #{tpu_custom_call.1} parent=5 // pred_region
      // Predicated region
      $region17: #{tpu_custom_call.1} parent=15 // pred_check
        %p106 = pneg %p29
      $region18: #{tpu_custom_call.1} parent=15 // pred_check_branch
        %108 = sbr.rel (%p106) target = $region20
      $region19: #{tpu_custom_call.1} parent=15 // pred_region
        %p109 = scmp.lt.s32.totalorder %s9, 1
        %s110 = scalar_select %p109, %s9, 1
        %s111 = smul.addr %s110, 2
        %s112 = smul.addr %s111, 8
        %s113 = scalar_lea.vmem %s0, %s112
      $region20: #{tpu_custom_call.1} parent=15 // pred_fallthru
        _
    $region16: #{tpu_custom_call.1} parent=5 // pred_fallthru
      _
    %p114 = scmp.le.s32.totalorder 1, %s9
    %p115 = scmp.lt.s32.totalorder %s9, 3
    %p116 = pnand %p114, %p115
    %p117 = pneg %p116
    // Predicated region
    $region21: #{tpu_custom_call.1} parent=5 // pred_check
      _
    $region22: #{tpu_custom_call.1} parent=5 // pred_check_branch
      %119 = sbr.rel (%p116) target = $region24
    $region23: #{tpu_custom_call.1} parent=5 // pred_region
      %s120 = ssub.s32 %s9, 1
      %p121 = scmp.lt.s32.totalorder %s14, 1
      %s122 = scalar_select %p121, %s14, 1
      %s123 = smul.addr %s122, 2
      %s124 = smul.addr %s123, 8
      %s125 = scalar_lea.vmem %s0, %s124
      %p126 = pneg %p35
      %p127 = pneg %p32
      %p128 = pneg %p61
      %p129 = pneg %p58
      %p130 = scmp.lt.s32.totalorder %s14, 1
      %s131 = scalar_select %p130, %s14, 1
      %s132 = smul.addr %s131, 2
      %s133 = smul.addr %s132, 8
      %s134 = scalar_lea.vmem %s1, %s133
      %p135 = pneg %p87
      %p136 = pneg %p84
      %p137 = scmp.lt.s32.totalorder %s14, 1
      %s138 = scalar_select %p137, %s14, 1
      %s139 = smul.addr %s138, 2
      %s140 = smul.addr %s139, 4
      %s141 = scalar_lea.vmem %s2, %s140
      %p142 = scmp.lt.s32.totalorder %s14, 1
      %s143 = scalar_select %p142, %s14, 1
      %s144 = smul.addr %s143, 2
      %s145 = smul.addr %s144, 8
      %s146 = scalar_lea.vmem %s0, %s145
      %p147 = scmp.lt.s32.totalorder %s14, 1
      %s148 = scalar_select %p147, %s14, 1
      %s149 = smul.addr %s148, 2
      %s150 = smul.addr %s149, 8
      %s151 = scalar_lea.vmem %s1, %s150
      %p152 = scmp.lt.s32.totalorder %s14, 1
      %s153 = scalar_select %p152, %s14, 1
      %s154 = smul.addr %s153, 2
      %s155 = smul.addr %s154, 4
      %s156 = scalar_lea.vmem %s2, %s155
      %v157 = vld [vmem:[%s146] sm:$0x7f]
      %v158 = vld [vmem:[%s146 + $0x8] sm:$0x7f]
      %vm159 = vcmask 1046528
      %v160 = vsel %vm159, %v157, inf
      %vm161 = vcmask 587776
      %v162 = vsel %vm161, %v158, inf
      %v163 = vmin.f32 %v160, %v162
      %164 = vmin.xlane.f32.xlu0 %v163
      %v165 = vpop.xlane.xlu0 %164
      %v166 = vlaneseq
      %v167 = vshrl.u32 %v166, 7
      %vm168 = vcmp.lt.s32.totalorder %v167, 3
      %v169 = vsel %vm168, %v165, 0.0
      %v170 = vsub.f32 %v157, %v169
      %v171 = vsub.f32 %v158, %v169
      %172 = vst [vmem:[%s151] sm:$0x7f] %v170
      %173 = vst.msk [vmem:[%s151 + $0x8] sm:$0x7f] %vm161, %v171
      %v174 = vrcp.pop 0.005
      %v175 = vmul.f32 %v170, %v174
      %v176 = vmul.f32 %v171, %v174
      %v177 = vfloor.f32 %v175
      %v178 = vfloor.f32 %v176
      %v179 = vcvt.f32.s32.to.zero.pseudo %v177
      %v180 = vcvt.f32.s32.to.zero.pseudo %v178
      %v181 = vcombine.low %v179, %v180
      %vm182 = vcmask 1042432
      %vm183 = vcmask 587780
      %vm184 = vmor %vm183, %vm182
      %185 = vst.msk [vmem:[%s156] sm:$0x77] %vm184, %v181
      %p186 = scmp.lt.s32.totalorder %s14, 1
      %s187 = scalar_select %p186, %s14, 1
      %s188 = smul.addr %s187, 2
      %s189 = smul.addr %s188, 8
      %s190 = scalar_lea.vmem %s1, %s189
      %p191 = scmp.lt.s32.totalorder %s14, 1
      %s192 = scalar_select %p191, %s14, 1
      %s193 = smul.addr %s192, 2
      %s194 = smul.addr %s193, 4
      %s195 = scalar_lea.vmem %s2, %s194
      // Predicated region
      $region25: #{tpu_custom_call.1} parent=23 // pred_check
        %p196 = pneg %p58
      $region26: #{tpu_custom_call.1} parent=23 // pred_check_branch
        %198 = sbr.rel (%p196) target = $region28
      $region27: #{tpu_custom_call.1} parent=23 // pred_region
        _
      $region28: #{tpu_custom_call.1} parent=23 // pred_fallthru
        _
      // Predicated region
      $region29: #{tpu_custom_call.1} parent=23 // pred_check
        %p199 = pneg %p84
      $region30: #{tpu_custom_call.1} parent=23 // pred_check_branch
        %201 = sbr.rel (%p199) target = $region32
      $region31: #{tpu_custom_call.1} parent=23 // pred_region
        _
      $region32: #{tpu_custom_call.1} parent=23 // pred_fallthru
        _
    $region24: #{tpu_custom_call.1} parent=5 // pred_fallthru
      _
    %p202 = scmp.le.s32.totalorder 2, %s9
    // Predicated region
    $region33: #{tpu_custom_call.1} parent=5 // pred_check
      %p203 = pneg %p202
    $region34: #{tpu_custom_call.1} parent=5 // pred_check_branch
      %205 = sbr.rel (%p203) target = $region36
    $region35: #{tpu_custom_call.1} parent=5 // pred_region
      %s206 = ssub.s32 %s9, 2
      // Predicated region
      $region37: #{tpu_custom_call.1} parent=35 // pred_check
        %p207 = pneg %p64
      $region38: #{tpu_custom_call.1} parent=35 // pred_check_branch
        %209 = sbr.rel (%p207) target = $region40
      $region39: #{tpu_custom_call.1} parent=35 // pred_region
        %p210 = scmp.lt.s32.totalorder %s15, 1
        %s211 = scalar_select %p210, %s15, 1
        %s212 = smul.addr %s211, 2
        %s213 = smul.addr %s212, 8
        %s214 = scalar_lea.vmem %s1, %s213
      $region40: #{tpu_custom_call.1} parent=35 // pred_fallthru
        _
      // Predicated region
      $region41: #{tpu_custom_call.1} parent=35 // pred_check
        %p215 = pneg %p90
      $region42: #{tpu_custom_call.1} parent=35 // pred_check_branch
        %217 = sbr.rel (%p215) target = $region44
      $region43: #{tpu_custom_call.1} parent=35 // pred_region
        %p218 = scmp.lt.s32.totalorder %s15, 1
        %s219 = scalar_select %p218, %s15, 1
        %s220 = smul.addr %s219, 2
        %s221 = smul.addr %s220, 4
        %s222 = scalar_lea.vmem %s2, %s221
      $region44: #{tpu_custom_call.1} parent=35 // pred_fallthru
        _
    $region36: #{tpu_custom_call.1} parent=5 // pred_fallthru
      _
  $region6: #{tpu_custom_call.1} parent=0 // loop_footer
    %s13 = sadd.s32 1, %s9
  $region7: #{tpu_custom_call.1} parent=0 // loop_footer_branch
    %8 = sbr.rel target = $region3
  $region8: #{tpu_custom_call.1} parent=0 // loop_exit
    _

</llo_original>
